<compile_context>
chip_gen: v7x
topology: tpu7x:2x2x1
jax: 0.10.0
libtpu: 0.0.40
codegen_flags: <defaults>
</compile_context>

<pallas_src>
import math
from functools import partial

import jax
import jax.numpy as jnp
from jax.experimental import pallas as pl
from jax.experimental.pallas import tpu as pltpu


def _round_up(x, m):
    return (x + m - 1) // m * m


def _kernel(s_ref, v_ref, wbd_ref, ws_s_ref, ws_v_ref, b_ref, out_ref,
            *, D, hv, vo, so, norm_eps, mxu_dtype):
    f32 = jnp.float32
    s = s_ref[...].astype(mxu_dtype)          # (TB, si)
    vflat = v_ref[...].astype(mxu_dtype)      # (TB, D*vi)
    wbd = wbd_ref[...].astype(mxu_dtype)      # (D*vi, D*hv + D*vo) block-diag
    ws_s = ws_s_ref[...].astype(mxu_dtype)    # (si, vo+so)
    ws_v = ws_v_ref[...].astype(mxu_dtype)    # (hv, vo+so)
    b = b_ref[...].astype(f32)                # (1,  vo+so)

    # Single fused Wv0 matmul (MXU), f32 accumulation.
    # Column layout: [hv_d0 | hv_d1 | ... | vo_d0 | vo_d1 | ...]
    vv = jnp.dot(vflat, wbd, preferred_element_type=f32)      # (TB, D*(hv+vo))

    # ||.||^2 over the spatial axis: static lane slices + VPU adds, f32.
    vn = vv[:, :D * hv]                                       # (TB, D*hv)
    sq = vn * vn
    nsq = sq[:, :hv]
    for d in range(1, D):
        nsq = nsq + sq[:, d * hv:(d + 1) * hv]
    vnorm = jnp.sqrt(jnp.maximum(nsq, norm_eps))              # (TB, hv), f32

    # Ws(concat([s, vnorm])) as two matmuls + bias (avoids a lane concat of
    # the activations).
    s_lin = (jnp.dot(s, ws_s, preferred_element_type=f32)
             + jnp.dot(vnorm.astype(mxu_dtype), ws_v,
                       preferred_element_type=f32)
             + b)                                             # (TB, vo+so)

    gate = s_lin[:, :vo]                                      # (TB, vo)
    gate_d = jnp.concatenate([gate] * D, axis=1)              # (TB, D*vo)
    v_gated = gate_d * vv[:, D * hv:]                         # (TB, D*vo)

    # Single lane-dense store: [D*vo gated-v columns | so scalar columns].
    out_ref[...] = jnp.concatenate(
        [v_gated, s_lin[:, vo:]], axis=1).astype(out_ref.dtype)


def make_gated_equiv_block(si, vi, so, vo, hv_dim=None, norm_eps=1e-6,
                           block_b=4096, mxu_dtype=None):
    """Returns forward(s, v, wv0_weight, ws_weight, ws_bias) -> (s_out, v_out)."""
    assert vo and vo > 0, "kernel implements the vo > 0 path"
    hv = hv_dim or max(vi, vo)

    def forward(s, v, wv0_weight, ws_weight, ws_bias):
        B, D = v.shape[0], v.shape[1]
        assert s.shape == (B, si)
        assert v.shape == (B, D, vi)
        assert wv0_weight.shape == (hv + vo, vi)
        assert ws_weight.shape == (vo + so, si + hv)
        assert ws_bias.shape == (vo + so,)

        out_dtype = s.dtype
        mm_dtype = mxu_dtype or s.dtype

        # --- tiny parameter reshapes (once per call, negligible traffic) ---
        wv_t = wv0_weight.T                           # (vi, hv+vo)
        wv_n, wv_g = wv_t[:, :hv], wv_t[:, hv:]       # (vi, hv), (vi, vo)
        # Block-diagonal Wv0 with permuted columns: all hv "norm" columns
        # first, all vo "gated" columns last -> one MXU push per tile.
        w_bd = jnp.zeros((D * vi, D * hv + D * vo), wv0_weight.dtype)
        for d in range(D):
            w_bd = w_bd.at[d * vi:(d + 1) * vi,
                           d * hv:(d + 1) * hv].set(wv_n)
            w_bd = w_bd.at[d * vi:(d + 1) * vi,
                           D * hv + d * vo:D * hv + (d + 1) * vo].set(wv_g)

        ws_wt = ws_weight.T                           # (si+hv, vo+so)
        ws_s = ws_wt[:si]                             # (si, vo+so)
        ws_v = ws_wt[si:]                             # (hv, vo+so)
        b2 = ws_bias.reshape(1, vo + so)

        # Lane-dense v slab: contiguous reshape, free in XLA.
        vflat = v.reshape(B, D * vi)

        # Batch tiling. No padding: grid = cdiv(B, tb); the ragged tail tile
        # is handled by Pallas boundary masking (rows independent, OOB writes
        # dropped).  Keep >= 2 steps when B > block_b (v7x megacore sharding).
        tb = _round_up(B, 8)
        if tb > block_b:
            tb = min(block_b, _round_up(pl.cdiv(B, 2), 8))
        grid = (pl.cdiv(B, tb),)

        out_w = D * vo + so
        out = pl.pallas_call(
            partial(_kernel, D=D, hv=hv, vo=vo, so=so,
                    norm_eps=norm_eps, mxu_dtype=mm_dtype),
            out_shape=jax.ShapeDtypeStruct((B, out_w), out_dtype),
            grid=grid,
            in_specs=[
                pl.BlockSpec((tb, si), lambda i: (i, 0)),
                pl.BlockSpec((tb, D * vi), lambda i: (i, 0)),
                # Parameters: constant index_map -> VMEM-resident across grid.
                pl.BlockSpec((D * vi, D * hv + D * vo), lambda i: (0, 0)),
                pl.BlockSpec((si, vo + so), lambda i: (0, 0)),
                pl.BlockSpec((hv, vo + so), lambda i: (0, 0)),
                pl.BlockSpec((1, vo + so), lambda i: (0, 0)),
            ],
            out_specs=pl.BlockSpec((tb, out_w), lambda i: (i, 0)),
            compiler_params=pltpu.CompilerParams(
                dimension_semantics=("parallel",),
                vmem_limit_bytes=32 * 1024 * 1024),
        )(s, vflat, w_bd, ws_s, ws_v, b2)

        v_out = out[:, :D * vo].reshape(B, D, vo)
        s_out = out[:, D * vo:]
        return s_out, v_out

    return forward


def reference_forward(s, v, wv0_weight, ws_weight, ws_bias, hv, so, vo,
                      norm_eps=1e-6):
    # Plain-JAX mirror of the torch forward (use_mlp=False, vo > 0), f32.
    vv = jnp.einsum('bdv,ov->bdo', v, wv0_weight)      # Wv0 (no bias)
    vnorm_pre, v_new = vv[..., :hv], vv[..., hv:]
    vnorm = jnp.sqrt(jnp.maximum(jnp.sum(vnorm_pre ** 2, axis=1), norm_eps))
    s_cat = jnp.concatenate([s, vnorm], axis=-1)
    s_lin = s_cat @ ws_weight.T + ws_bias
    gate, s_out = s_lin[:, :vo], s_lin[:, vo:]
    v_out = gate[:, None, :] * v_new
    return s_out, v_out


if __name__ == "__main__":
    D = 3
    SI, VI = 32, 16
    SO, VO = 24, 16
    HV = max(VI, VO)          # default hv_dim

    key = jax.random.PRNGKey(0)
    k1, k2, k3, k4, k5, k6, k7 = jax.random.split(key, 7)

    # kaiming_uniform_(a=sqrt(5)) -> bound = sqrt(1 / fan_in)
    bw_v = math.sqrt(1.0 / VI)
    wv0_weight = jax.random.uniform(k1, (HV + VO, VI), jnp.float32, -bw_v, bw_v)
    bw_s = math.sqrt(1.0 / (SI + HV))
    ws_weight = jax.random.uniform(k2, (VO + SO, SI + HV), jnp.float32,
                                   -bw_s, bw_s)
    # Module init zeros the bias; use a nonzero bias here to exercise the add.
    ws_bias = 0.1 * jax.random.normal(k3, (VO + SO,), jnp.float32)

    # ---- Test 1: small fp32 batch (single tile), tight tolerance ----------
    B = 8
    s_in = jax.random.normal(k4, (B, SI), jnp.float32)
    v_in = jax.random.normal(k5, (B, D, VI), jnp.float32)

    fwd = make_gated_equiv_block(SI, VI, SO, VO)
    s_out, v_out = fwd(s_in, v_in, wv0_weight, ws_weight, ws_bias)
    jax.block_until_ready((s_out, v_out))

    s_ref, v_ref = reference_forward(s_in, v_in, wv0_weight, ws_weight,
                                     ws_bias, HV, SO, VO)
    assert s_out.shape == (B, SO) and v_out.shape == (B, D, VO)
    assert jnp.allclose(s_out, s_ref, rtol=1e-3, atol=1e-5), \
        float(jnp.max(jnp.abs(s_out - s_ref)))
    assert jnp.allclose(v_out, v_ref, rtol=1e-3, atol=1e-5), \
        float(jnp.max(jnp.abs(v_out - v_ref)))

    # ---- Test 2: ragged multi-tile bf16 batch (exercises the cdiv grid,
    #      boundary-masked tail tile, bf16 I/O + bf16 MXU operands) ----------
    B2 = 1000
    s2 = jax.random.normal(k6, (B2, SI), jnp.float32).astype(jnp.bfloat16)
    v2 = jax.random.normal(k7, (B2, D, VI), jnp.float32).astype(jnp.bfloat16)

    fwd2 = make_gated_equiv_block(SI, VI, SO, VO, block_b=256)
    s2_out, v2_out = fwd2(s2, v2, wv0_weight, ws_weight, ws_bias)
    jax.block_until_ready((s2_out, v2_out))
    assert s2_out.dtype == jnp.bfloat16 and v2_out.dtype == jnp.bfloat16
    assert s2_out.shape == (B2, SO) and v2_out.shape == (B2, D, VO)

    s2_ref, v2_ref = reference_forward(s2.astype(jnp.float32),
                                       v2.astype(jnp.float32),
                                       wv0_weight, ws_weight, ws_bias,
                                       HV, SO, VO)
    assert jnp.allclose(s2_out.astype(jnp.float32), s2_ref,
                        rtol=5e-2, atol=2e-2), \
        float(jnp.max(jnp.abs(s2_out.astype(jnp.float32) - s2_ref)))
    assert jnp.allclose(v2_out.astype(jnp.float32), v2_ref,
                        rtol=5e-2, atol=2e-2), \
        float(jnp.max(jnp.abs(v2_out.astype(jnp.float32) - v2_ref)))

    print("KERNEL_OK")
</pallas_src>

<mosaic_0001>
module attributes {stable_mosaic.version = 11 : i64} {
  func.func @_kernel(%arg0: i32, %arg1: memref<8x32xf32, #tpu.memory_space<vmem>>, %arg2: memref<8x48xf32, #tpu.memory_space<vmem>>, %arg3: memref<48x96xf32, #tpu.memory_space<vmem>>, %arg4: memref<32x40xf32, #tpu.memory_space<vmem>>, %arg5: memref<16x40xf32, #tpu.memory_space<vmem>>, %arg6: memref<1x40xf32, #tpu.memory_space<vmem>>, %arg7: memref<8x72xf32, #tpu.memory_space<vmem>>) attributes {dimension_semantics = [#tpu.dimension_semantics<parallel>], iteration_bounds = array<i64: 1>, scalar_prefetch = 0 : i64, scratch_operands = 0 : i64, tpu.core_type = #tpu.core_type<tc>, window_params = [{transform_indices = @transform_0, window_bounds = array<i64: 8, 32>}, {transform_indices = @transform_1, window_bounds = array<i64: 8, 48>}, {pipeline_mode = #tpu.pipeline_mode<synchronous>, transform_indices = @transform_2, window_bounds = array<i64: 48, 96>}, {pipeline_mode = #tpu.pipeline_mode<synchronous>, transform_indices = @transform_3, window_bounds = array<i64: 32, 40>}, {pipeline_mode = #tpu.pipeline_mode<synchronous>, transform_indices = @transform_4, window_bounds = array<i64: 16, 40>}, {pipeline_mode = #tpu.pipeline_mode<synchronous>, transform_indices = @transform_5, window_bounds = array<i64: 1, 40>}, {transform_indices = @transform_6, window_bounds = array<i64: 8, 72>}]} {
    %c0 = arith.constant 0 : index
    %c0_0 = arith.constant 0 : index
    %0 = vector.load %arg1[%c0, %c0_0] : memref<8x32xf32, #tpu.memory_space<vmem>>, vector<8x32xf32>
    %c0_1 = arith.constant 0 : index
    %c0_2 = arith.constant 0 : index
    %1 = vector.load %arg2[%c0_1, %c0_2] : memref<8x48xf32, #tpu.memory_space<vmem>>, vector<8x48xf32>
    %c0_3 = arith.constant 0 : index
    %c0_4 = arith.constant 0 : index
    %2 = vector.load %arg3[%c0_3, %c0_4] : memref<48x96xf32, #tpu.memory_space<vmem>>, vector<48x96xf32>
    %c0_5 = arith.constant 0 : index
    %c0_6 = arith.constant 0 : index
    %3 = vector.load %arg4[%c0_5, %c0_6] : memref<32x40xf32, #tpu.memory_space<vmem>>, vector<32x40xf32>
    %c0_7 = arith.constant 0 : index
    %c0_8 = arith.constant 0 : index
    %4 = vector.load %arg5[%c0_7, %c0_8] : memref<16x40xf32, #tpu.memory_space<vmem>>, vector<16x40xf32>
    %c0_9 = arith.constant 0 : index
    %c0_10 = arith.constant 0 : index
    %5 = vector.load %arg6[%c0_9, %c0_10] : memref<1x40xf32, #tpu.memory_space<vmem>>, vector<1x40xf32>
    %cst = arith.constant dense<0.000000e+00> : vector<8x96xf32>
    %6 = tpu.matmul %1, %2, %cst {dimension_numbers = #tpu.dot_dimension_numbers<[1], [0], [0], [1], [0, 0, 1, 1], [], []>} : vector<8x48xf32>, vector<48x96xf32>, vector<8x96xf32> -> vector<8x96xf32>
    %7 = vector.extract_strided_slice %6 {offsets = [0, 0], sizes = [8, 48], strides = [1, 1]} : vector<8x96xf32> to vector<8x48xf32>
    %8 = arith.mulf %7, %7 : vector<8x48xf32>
    %9 = vector.extract_strided_slice %8 {offsets = [0, 0], sizes = [8, 16], strides = [1, 1]} : vector<8x48xf32> to vector<8x16xf32>
    %10 = vector.extract_strided_slice %8 {offsets = [0, 16], sizes = [8, 16], strides = [1, 1]} : vector<8x48xf32> to vector<8x16xf32>
    %11 = arith.addf %9, %10 : vector<8x16xf32>
    %12 = vector.extract_strided_slice %8 {offsets = [0, 32], sizes = [8, 16], strides = [1, 1]} : vector<8x48xf32> to vector<8x16xf32>
    %13 = arith.addf %11, %12 : vector<8x16xf32>
    %cst_11 = arith.constant 9.99999997E-7 : f32
    %14 = vector.broadcast %cst_11 : f32 to vector<8x16xf32>
    %15 = arith.maximumf %13, %14 : vector<8x16xf32>
    %16 = math.sqrt %15 : vector<8x16xf32>
    %cst_12 = arith.constant dense<0.000000e+00> : vector<8x40xf32>
    %17 = tpu.matmul %0, %3, %cst_12 {dimension_numbers = #tpu.dot_dimension_numbers<[1], [0], [0], [1], [0, 0, 1, 1], [], []>} : vector<8x32xf32>, vector<32x40xf32>, vector<8x40xf32> -> vector<8x40xf32>
    %cst_13 = arith.constant dense<0.000000e+00> : vector<8x40xf32>
    %18 = tpu.matmul %16, %4, %cst_13 {dimension_numbers = #tpu.dot_dimension_numbers<[1], [0], [0], [1], [0, 0, 1, 1], [], []>} : vector<8x16xf32>, vector<16x40xf32>, vector<8x40xf32> -> vector<8x40xf32>
    %19 = arith.addf %17, %18 : vector<8x40xf32>
    %20 = vector.broadcast %5 : vector<1x40xf32> to vector<8x40xf32>
    %21 = arith.addf %19, %20 : vector<8x40xf32>
    %22 = vector.extract_strided_slice %21 {offsets = [0, 0], sizes = [8, 16], strides = [1, 1]} : vector<8x40xf32> to vector<8x16xf32>
    %23 = tpu.concatenate %22, %22, %22 in 1 : vector<8x16xf32>, vector<8x16xf32>, vector<8x16xf32> -> vector<8x48xf32>
    %24 = vector.extract_strided_slice %6 {offsets = [0, 48], sizes = [8, 48], strides = [1, 1]} : vector<8x96xf32> to vector<8x48xf32>
    %25 = arith.mulf %23, %24 : vector<8x48xf32>
    %26 = vector.extract_strided_slice %21 {offsets = [0, 16], sizes = [8, 24], strides = [1, 1]} : vector<8x40xf32> to vector<8x24xf32>
    %27 = tpu.concatenate %25, %26 in 1 : vector<8x48xf32>, vector<8x24xf32> -> vector<8x72xf32>
    %c0_14 = arith.constant 0 : index
    %c0_15 = arith.constant 0 : index
    %28 = vector.load %arg7[%c0_14, %c0_15] : memref<8x72xf32, #tpu.memory_space<vmem>>, vector<8x72xf32>
    tpu.vector_store %arg7[%c0_14, %c0_15], %27 {strides = array<i32>} : memref<8x72xf32, #tpu.memory_space<vmem>>, vector<8x72xf32>,
    return
  }
  func.func @transform_0(%arg0: i32) -> (i32, i32) {
    %c0_i32 = arith.constant 0 : i32
    %c0_i32_0 = arith.constant 0 : i32
    return %arg0, %c0_i32 : i32, i32
  }
  func.func @transform_1(%arg0: i32) -> (i32, i32) {
    %c0_i32 = arith.constant 0 : i32
    %c0_i32_0 = arith.constant 0 : i32
    return %arg0, %c0_i32 : i32, i32
  }
  func.func @transform_2(%arg0: i32) -> (i32, i32) {
    %c0_i32 = arith.constant 0 : i32
    %c0_i32_0 = arith.constant 0 : i32
    %c0_i32_1 = arith.constant 0 : i32
    return %c0_i32, %c0_i32_0 : i32, i32
  }
  func.func @transform_3(%arg0: i32) -> (i32, i32) {
    %c0_i32 = arith.constant 0 : i32
    %c0_i32_0 = arith.constant 0 : i32
    %c0_i32_1 = arith.constant 0 : i32
    return %c0_i32, %c0_i32_0 : i32, i32
  }
  func.func @transform_4(%arg0: i32) -> (i32, i32) {
    %c0_i32 = arith.constant 0 : i32
    %c0_i32_0 = arith.constant 0 : i32
    %c0_i32_1 = arith.constant 0 : i32
    return %c0_i32, %c0_i32_0 : i32, i32
  }
  func.func @transform_5(%arg0: i32) -> (i32, i32) {
    %c0_i32 = arith.constant 0 : i32
    %c0_i32_0 = arith.constant 0 : i32
    %c0_i32_1 = arith.constant 0 : i32
    return %c0_i32, %c0_i32_0 : i32, i32
  }
  func.func @transform_6(%arg0: i32) -> (i32, i32) {
    %c0_i32 = arith.constant 0 : i32
    %c0_i32_0 = arith.constant 0 : i32
    return %arg0, %c0_i32 : i32, i32
  }
}

</mosaic_0001>

<llo_original>
// kernel: tpu_custom_call.1
$region0: #{tpu_custom_call.1}
  #allocation0 [shape = 'u32[]', space=smem, size = 0x4, offset = 0x4, fixed_abs, tag = 'smem constant byte address 0x4 - core index']
  #allocation1 [shape = 'u32[144,128]{1,0:T(1,128)}', space=vmem, size = 0x12000, scoped, tag = 'internal scratch']
  %s0 = inlined_call_operand.hbm [shape: f32[8,32], index: 0, kind: input, shape index: {}]
  %s1 = inlined_call_operand.hbm [shape: f32[8,48], index: 1, kind: input, shape index: {}]
  %s2 = inlined_call_operand.hbm [shape: f32[48,96], index: 2, kind: input, shape index: {}]
  %s3 = inlined_call_operand.hbm [shape: f32[32,40], index: 3, kind: input, shape index: {}]
  %s4 = inlined_call_operand.hbm [shape: f32[16,40], index: 4, kind: input, shape index: {}]
  %s5 = inlined_call_operand.vmem [shape: f32[1,40], index: 5, kind: input, shape index: {}]
  %s6 = inlined_call_operand.hbm [shape: f32[8,72], index: 6, kind: output, shape index: {}]
  %s7 = sld [smem:[#allocation0]]
  $region54: #{tpu_custom_call.1} parent=0
    _
  %s9 = ssub.s32 1, %s7
  %s10 = scalar_select 0, %s9, %s7
  $region1: #{tpu_custom_call.1} parent=0
    #allocation2 [shape = 'u8[4096]{0}', space=vmem, size = 0x1000, scoped, tag = 'input window, operand 0, single buffered']
    #allocation3 [shape = 's32[1]{0}', space=sflag, size = 0x4, scoped, tag = 'scoped memory for tpu_custom_call.1']
    #allocation4 [shape = 's32[1]{0}', space=sflag, size = 0x4, scoped, tag = 'scoped memory for tpu_custom_call.1']
    #allocation5 [shape = 'u8[4096]{0}', space=vmem, size = 0x1000, scoped, tag = 'input window, operand 1, single buffered']
    #allocation6 [shape = 's32[1]{0}', space=sflag, size = 0x4, scoped, tag = 'scoped memory for tpu_custom_call.1']
    #allocation7 [shape = 'u8[24576]{0}', space=vmem, size = 0x6000, scoped, tag = 'input window, operand 2, single buffered']
    #allocation8 [shape = 'u8[16384]{0}', space=vmem, size = 0x4000, scoped, tag = 'input window, operand 3, single buffered']
    #allocation9 [shape = 's32[1]{0}', space=sflag, size = 0x4, scoped, tag = 'scoped memory for tpu_custom_call.1']
    #allocation10 [shape = 'u8[8192]{0}', space=vmem, size = 0x2000, scoped, tag = 'input window, operand 4, single buffered']
    #allocation11 [shape = 'u8[4096]{0}', space=vmem, size = 0x1000, scoped, tag = 'output window, operand 0, single buffered']
    %11 = vsyncpa [#allocation3], 0
    %12 = vsyncpa [#allocation6], 0
    %13 = vsyncpa [#allocation9], 0
    %14 = vsyncpa [#allocation4], 0
    // Predicated region
    $region2: #{tpu_custom_call.1} parent=1 // pred_check
      _
    $region3: #{tpu_custom_call.1} parent=1 // pred_check_branch
      %16 = sbr.rel (0) target = $region5
    $region4: #{tpu_custom_call.1} parent=1 // pred_region
      %s18 = ssub.s32 128, 128
      %19 = vsyncadd [#allocation3], %s18
      %s21 = sshll.u32 [#allocation2], 4
      %s22 = int_to_ptr.vmem [resolvable:$true] %s21
      %24 = dma.hbm_to_vmem [thread:$0]  %s0, 128, %s22, [#allocation3]
    $region5: #{tpu_custom_call.1} parent=1 // pred_fallthru
      _
    // Predicated region
    $region6: #{tpu_custom_call.1} parent=1 // pred_check
      _
    $region7: #{tpu_custom_call.1} parent=1 // pred_check_branch
      %26 = sbr.rel (0) target = $region9
    $region8: #{tpu_custom_call.1} parent=1 // pred_region
      %s28 = ssub.s32 128, 128
      %29 = vsyncadd [#allocation6], %s28
      %s31 = sshll.u32 [#allocation5], 4
      %s32 = int_to_ptr.vmem [resolvable:$true] %s31
      %34 = dma.hbm_to_vmem [thread:$0]  %s1, 128, %s32, [#allocation6]
    $region9: #{tpu_custom_call.1} parent=1 // pred_fallthru
      _
    // Predicated region
    $region10: #{tpu_custom_call.1} parent=1 // pred_check
      _
    $region11: #{tpu_custom_call.1} parent=1 // pred_check_branch
      %36 = sbr.rel (0) target = $region13
    $region12: #{tpu_custom_call.1} parent=1 // pred_region
      %s38 = ssub.s32 768, 768
      %39 = vsyncadd [#allocation6], %s38
      %s40 = sshll.u32 [#allocation7], 4
      %s41 = int_to_ptr.vmem [resolvable:$true] %s40
      %46 = dma.hbm_to_vmem [thread:$0]  %s2, 768, %s41, [#allocation6], 128, 128, 8
    $region13: #{tpu_custom_call.1} parent=1 // pred_fallthru
      _
    // Predicated region
    $region14: #{tpu_custom_call.1} parent=1 // pred_check
      _
    $region15: #{tpu_custom_call.1} parent=1 // pred_check_branch
      %48 = sbr.rel (0) target = $region17
    $region16: #{tpu_custom_call.1} parent=1 // pred_region
      %s50 = ssub.s32 512, 512
      %51 = vsyncadd [#allocation9], %s50
      %s52 = sshll.u32 [#allocation8], 4
      %s53 = int_to_ptr.vmem [resolvable:$true] %s52
      %58 = dma.hbm_to_vmem [thread:$0]  %s3, 512, %s53, [#allocation9], 128, 128, 8
    $region17: #{tpu_custom_call.1} parent=1 // pred_fallthru
      _
    // Predicated region
    $region18: #{tpu_custom_call.1} parent=1 // pred_check
      _
    $region19: #{tpu_custom_call.1} parent=1 // pred_check_branch
      %60 = sbr.rel (0) target = $region21
    $region20: #{tpu_custom_call.1} parent=1 // pred_region
      %s62 = ssub.s32 256, 256
      %63 = vsyncadd [#allocation9], %s62
      %s64 = sshll.u32 [#allocation10], 4
      %s65 = int_to_ptr.vmem [resolvable:$true] %s64
      %70 = dma.hbm_to_vmem [thread:$0]  %s4, 256, %s65, [#allocation9], 128, 128, 8
    $region21: #{tpu_custom_call.1} parent=1 // pred_fallthru
      _
    // Predicated region
    $region22: #{tpu_custom_call.1} parent=1 // pred_check
      _
    $region23: #{tpu_custom_call.1} parent=1 // pred_check_branch
      %72 = sbr.rel (0) target = $region25
    $region24: #{tpu_custom_call.1} parent=1 // pred_region
      _
    $region25: #{tpu_custom_call.1} parent=1 // pred_fallthru
      _
    // Predicated region
    $region26: #{tpu_custom_call.1} parent=1 // pred_check
      _
    $region27: #{tpu_custom_call.1} parent=1 // pred_check_branch
      %74 = sbr.rel (0) target = $region29
    $region28: #{tpu_custom_call.1} parent=1 // pred_region
      %75 = dma.done [#allocation3], 128
    $region29: #{tpu_custom_call.1} parent=1 // pred_fallthru
      _
    // Predicated region
    $region30: #{tpu_custom_call.1} parent=1 // pred_check
      _
    $region31: #{tpu_custom_call.1} parent=1 // pred_check_branch
      %77 = sbr.rel (0) target = $region33
    $region32: #{tpu_custom_call.1} parent=1 // pred_region
      %78 = dma.done [#allocation6], 128
    $region33: #{tpu_custom_call.1} parent=1 // pred_fallthru
      _
    // Predicated region
    $region34: #{tpu_custom_call.1} parent=1 // pred_check
      _
    $region35: #{tpu_custom_call.1} parent=1 // pred_check_branch
      %80 = sbr.rel (0) target = $region37
    $region36: #{tpu_custom_call.1} parent=1 // pred_region
      %81 = dma.done [#allocation6], 768
    $region37: #{tpu_custom_call.1} parent=1 // pred_fallthru
      _
    // Predicated region
    $region38: #{tpu_custom_call.1} parent=1 // pred_check
      _
    $region39: #{tpu_custom_call.1} parent=1 // pred_check_branch
      %83 = sbr.rel (0) target = $region41
    $region40: #{tpu_custom_call.1} parent=1 // pred_region
      %84 = dma.done [#allocation9], 512
    $region41: #{tpu_custom_call.1} parent=1 // pred_fallthru
      _
    // Predicated region
    $region42: #{tpu_custom_call.1} parent=1 // pred_check
      _
    $region43: #{tpu_custom_call.1} parent=1 // pred_check_branch
      %86 = sbr.rel (0) target = $region45
    $region44: #{tpu_custom_call.1} parent=1 // pred_region
      %87 = dma.done [#allocation9], 256
    $region45: #{tpu_custom_call.1} parent=1 // pred_fallthru
      _
    %v88 = vld [vmem:[#allocation2] sm:$0xff]
    %v89 = vld [vmem:[#allocation5] sm:$0xff]
    %v90 = vld [vmem:[#allocation7] sm:$0xff]
    %v91 = vld [vmem:[#allocation7 + $0x8] sm:$0xff]
    %v92 = vld [vmem:[#allocation7 + $0x10] sm:$0xff]
    %v93 = vld [vmem:[#allocation7 + $0x18] sm:$0xff]
    %v94 = vld [vmem:[#allocation7 + $0x20] sm:$0xff]
    %v95 = vld [vmem:[#allocation7 + $0x28] sm:$0xff]
    %v96 = vld [vmem:[#allocation8] sm:$0xff]
    %v97 = vld [vmem:[#allocation8 + $0x8] sm:$0xff]
    %v98 = vld [vmem:[#allocation8 + $0x10] sm:$0xff]
    %v99 = vld [vmem:[#allocation8 + $0x18] sm:$0xff]
    %v100 = vld [vmem:[#allocation10] sm:$0xff]
    %v101 = vld [vmem:[#allocation10 + $0x8] sm:$0xff]
    %v102 = vld [vmem:[%s5] sm:$0x1]
    %vm103 = vcmask 392192
    %v105 = vsel %vm103, %v89, 0
    %107 = vmatprep.subr.mxu0 0.0
    %108 = vmatpush1.msra.mxu0 %v90
    %109 = vmatprep.subr.mxu0 0.0
    %110 = vmatpush1.msra.mxu0 %v91
    %111 = vmatprep.subr.mxu0 0.0
    %112 = vmatpush1.msra.mxu0 %v92
    %113 = vmatprep.subr.mxu0 0.0
    %114 = vmatpush1.msra.mxu0 %v93
    %115 = vmatprep.subr.mxu0 0.0
    %116 = vmatpush1.msra.mxu0 %v94
    %117 = vmatprep.subr.mxu0 0.0
    %118 = vmatpush1.msra.mxu0 %v95
    %119 = vmatprep.subr.mxu0 0.0
    %120 = vmatpush1.msra.mxu0 0.0
    %121 = vmatprep.subr.mxu0 0.0
    %122 = vmatpush1.msra.mxu0 0.0
    %123 = vmatprep.subr.mxu0 0.0
    %124 = vmatpush1.msra.mxu0 0.0
    %125 = vmatprep.subr.mxu0 0.0
    %126 = vmatpush1.msra.mxu0 0.0
    %127 = vmatprep.subr.mxu0 0.0
    %128 = vmatpush1.msra.mxu0 0.0
    %129 = vmatprep.subr.mxu0 0.0
    %130 = vmatpush1.msra.mxu0 0.0
    %131 = vmatprep.subr.mxu0 0.0
    %132 = vmatpush1.msra.mxu0 0.0
    %133 = vmatprep.subr.mxu0 0.0
    %134 = vmatpush1.msra.mxu0 0.0
    %135 = vmatprep.subr.mxu0 0.0
    %136 = vmatpush1.msra.mxu0 0.0
    %137 = vmatprep.subr.mxu0 0.0
    %138 = vmatpush1.msra.mxu0 0.0
    %139 = vmatprep.subr.mxu0 0.0
    %140 = vmatpush1.msra.mxu0 0.0
    %141 = vmatprep.subr.mxu0 0.0
    %142 = vmatpush1.msra.mxu0 0.0
    %143 = vmatprep.subr.mxu0 0.0
    %144 = vmatpush1.msra.mxu0 0.0
    %145 = vmatprep.subr.mxu0 0.0
    %146 = vmatpush1.msra.mxu0 0.0
    %147 = vmatprep.subr.mxu0 0.0
    %148 = vmatpush1.msra.mxu0 0.0
    %149 = vmatprep.subr.mxu0 0.0
    %150 = vmatpush1.msra.mxu0 0.0
    %151 = vmatprep.subr.mxu0 0.0
    %152 = vmatpush1.msra.mxu0 0.0
    %153 = vmatprep.subr.mxu0 0.0
    %154 = vmatpush1.msra.mxu0 0.0
    %155 = vmatprep.subr.mxu0 0.0
    %156 = vmatpush1.msra.mxu0 0.0
    %157 = vmatprep.subr.mxu0 0.0
    %158 = vmatpush1.msra.mxu0 0.0
    %159 = vmatprep.subr.mxu0 0.0
    %160 = vmatpush1.msra.mxu0 0.0
    %161 = vmatprep.subr.mxu0 0.0
    %162 = vmatpush1.msra.mxu0 0.0
    %163 = vmatprep.subr.mxu0 0.0
    %164 = vmatpush1.msra.mxu0 0.0
    %165 = vmatprep.subr.mxu0 0.0
    %166 = vmatpush1.msra.mxu0 0.0
    %167 = vmatprep.subr.mxu0 0.0
    %168 = vmatpush1.msra.mxu0 0.0
    %169 = vmatprep.subr.mxu0 0.0
    %170 = vmatpush1.msra.mxu0 0.0
    %171 = vmatprep.mubr.f32.mxu0 0.0
    %172 = vmatmul.mubr.f32.gmra.mrb[0].mxu0 %v105
    %v173 = vpop.f32.mrb[0].mxu0
    %v174 = vadd.f32 0.0, %v173
    %v175 = vpop.f32.mrb[0].mxu0
    %176 = vdwg.mxu0
    %v177 = vmul.f32 %v174, %v174
    %179 = vrot.lane.b32.xlu0 %v177, 112
    %v180 = vpop.permute.xlu0 %179
    %v182 = vadd.f32 %v177, %v180
    %183 = vrot.lane.b32.xlu0 %v177, 96
    %v184 = vpop.permute.xlu0 %183
    %v186 = vadd.f32 %v182, %v184
    %v187 = vmax.f32 %v186, 1e-06
    %v188 = vrsqrt.pop %v187
    %v189 = vmul.f32 %v187, %v188
    %vm190 = vcmp.eq.f32.partialorder %v187, inf
    %v191 = vsel %vm190, %v187, %v189
    %vm192 = vcmp.eq.f32.partialorder %v187, 0.0
    %v193 = vand.u32 %v187, 2147483648
    %v194 = vsel %vm192, %v193, %v191
    %vm195 = vcmask 130048
    %v197 = vsel %vm195, %v194, 0
    %199 = vmatprep.subr.mxu0 0.0
    %200 = vmatpush1.msra.mxu0 %v100
    %201 = vmatprep.subr.mxu0 0.0
    %202 = vmatpush1.msra.mxu0 %v101
    %203 = vmatprep.subr.mxu0 0.0
    %204 = vmatpush1.msra.mxu0 0.0
    %205 = vmatprep.subr.mxu0 0.0
    %206 = vmatpush1.msra.mxu0 0.0
    %207 = vmatprep.subr.mxu0 0.0
    %208 = vmatpush1.msra.mxu0 0.0
    %209 = vmatprep.subr.mxu0 0.0
    %210 = vmatpush1.msra.mxu0 0.0
    %211 = vmatprep.subr.mxu0 0.0
    %212 = vmatpush1.msra.mxu0 0.0
    %213 = vmatprep.subr.mxu0 0.0
    %214 = vmatpush1.msra.mxu0 0.0
    %215 = vmatprep.subr.mxu0 0.0
    %216 = vmatpush1.msra.mxu0 0.0
    %217 = vmatprep.subr.mxu0 0.0
    %218 = vmatpush1.msra.mxu0 0.0
    %219 = vmatprep.subr.mxu0 0.0
    %220 = vmatpush1.msra.mxu0 0.0
    %221 = vmatprep.subr.mxu0 0.0
    %222 = vmatpush1.msra.mxu0 0.0
    %223 = vmatprep.subr.mxu0 0.0
    %224 = vmatpush1.msra.mxu0 0.0
    %225 = vmatprep.subr.mxu0 0.0
    %226 = vmatpush1.msra.mxu0 0.0
    %227 = vmatprep.subr.mxu0 0.0
    %228 = vmatpush1.msra.mxu0 0.0
    %229 = vmatprep.subr.mxu0 0.0
    %230 = vmatpush1.msra.mxu0 0.0
    %231 = vmatprep.subr.mxu0 0.0
    %232 = vmatpush1.msra.mxu0 0.0
    %233 = vmatprep.subr.mxu0 0.0
    %234 = vmatpush1.msra.mxu0 0.0
    %235 = vmatprep.subr.mxu0 0.0
    %236 = vmatpush1.msra.mxu0 0.0
    %237 = vmatprep.subr.mxu0 0.0
    %238 = vmatpush1.msra.mxu0 0.0
    %239 = vmatprep.subr.mxu0 0.0
    %240 = vmatpush1.msra.mxu0 0.0
    %241 = vmatprep.subr.mxu0 0.0
    %242 = vmatpush1.msra.mxu0 0.0
    %243 = vmatprep.subr.mxu0 0.0
    %244 = vmatpush1.msra.mxu0 0.0
    %245 = vmatprep.subr.mxu0 0.0
    %246 = vmatpush1.msra.mxu0 0.0
    %247 = vmatprep.subr.mxu0 0.0
    %248 = vmatpush1.msra.mxu0 0.0
    %249 = vmatprep.subr.mxu0 0.0
    %250 = vmatpush1.msra.mxu0 0.0
    %251 = vmatprep.subr.mxu0 0.0
    %252 = vmatpush1.msra.mxu0 0.0
    %253 = vmatprep.subr.mxu0 0.0
    %254 = vmatpush1.msra.mxu0 0.0
    %255 = vmatprep.subr.mxu0 0.0
    %256 = vmatpush1.msra.mxu0 0.0
    %257 = vmatprep.subr.mxu0 0.0
    %258 = vmatpush1.msra.mxu0 0.0
    %259 = vmatprep.subr.mxu0 0.0
    %260 = vmatpush1.msra.mxu0 0.0
    %261 = vmatprep.subr.mxu0 0.0
    %262 = vmatpush1.msra.mxu0 0.0
    %263 = vmatprep.mubr.f32.mxu0 0.0
    %264 = vmatmul.mubr.f32.gmra.mrb[0].mxu0 %v197
    %v265 = vpop.f32.mrb[0].mxu0
    %v266 = vadd.f32 0.0, %v265
    %v267 = vpop.f32.mrb[0].mxu0
    %268 = vdwg.mxu0
    %vm269 = vcmask 261120
    %v271 = vsel %vm269, %v88, 0
    %273 = vmatprep.subr.mxu0 0.0
    %274 = vmatpush1.msra.mxu0 %v96
    %275 = vmatprep.subr.mxu0 0.0
    %276 = vmatpush1.msra.mxu0 %v97
    %277 = vmatprep.subr.mxu0 0.0
    %278 = vmatpush1.msra.mxu0 %v98
    %279 = vmatprep.subr.mxu0 0.0
    %280 = vmatpush1.msra.mxu0 %v99
    %281 = vmatprep.subr.mxu0 0.0
    %282 = vmatpush1.msra.mxu0 0.0
    %283 = vmatprep.subr.mxu0 0.0
    %284 = vmatpush1.msra.mxu0 0.0
    %285 = vmatprep.subr.mxu0 0.0
    %286 = vmatpush1.msra.mxu0 0.0
    %287 = vmatprep.subr.mxu0 0.0
    %288 = vmatpush1.msra.mxu0 0.0
    %289 = vmatprep.subr.mxu0 0.0
    %290 = vmatpush1.msra.mxu0 0.0
    %291 = vmatprep.subr.mxu0 0.0
    %292 = vmatpush1.msra.mxu0 0.0
    %293 = vmatprep.subr.mxu0 0.0
    %294 = vmatpush1.msra.mxu0 0.0
    %295 = vmatprep.subr.mxu0 0.0
    %296 = vmatpush1.msra.mxu0 0.0
    %297 = vmatprep.subr.mxu0 0.0
    %298 = vmatpush1.msra.mxu0 0.0
    %299 = vmatprep.subr.mxu0 0.0
    %300 = vmatpush1.msra.mxu0 0.0
    %301 = vmatprep.subr.mxu0 0.0
    %302 = vmatpush1.msra.mxu0 0.0
    %303 = vmatprep.subr.mxu0 0.0
    %304 = vmatpush1.msra.mxu0 0.0
    %305 = vmatprep.subr.mxu0 0.0
    %306 = vmatpush1.msra.mxu0 0.0
    %307 = vmatprep.subr.mxu0 0.0
    %308 = vmatpush1.msra.mxu0 0.0
    %309 = vmatprep.subr.mxu0 0.0
    %310 = vmatpush1.msra.mxu0 0.0
    %311 = vmatprep.subr.mxu0 0.0
    %312 = vmatpush1.msra.mxu0 0.0
    %313 = vmatprep.subr.mxu0 0.0
    %314 = vmatpush1.msra.mxu0 0.0
    %315 = vmatprep.subr.mxu0 0.0
    %316 = vmatpush1.msra.mxu0 0.0
    %317 = vmatprep.subr.mxu0 0.0
    %318 = vmatpush1.msra.mxu0 0.0
    %319 = vmatprep.subr.mxu0 0.0
    %320 = vmatpush1.msra.mxu0 0.0
    %321 = vmatprep.subr.mxu0 0.0
    %322 = vmatpush1.msra.mxu0 0.0
    %323 = vmatprep.subr.mxu0 0.0
    %324 = vmatpush1.msra.mxu0 0.0
    %325 = vmatprep.subr.mxu0 0.0
    %326 = vmatpush1.msra.mxu0 0.0
    %327 = vmatprep.subr.mxu0 0.0
    %328 = vmatpush1.msra.mxu0 0.0
    %329 = vmatprep.subr.mxu0 0.0
    %330 = vmatpush1.msra.mxu0 0.0
    %331 = vmatprep.subr.mxu0 0.0
    %332 = vmatpush1.msra.mxu0 0.0
    %333 = vmatprep.subr.mxu0 0.0
    %334 = vmatpush1.msra.mxu0 0.0
    %335 = vmatprep.subr.mxu0 0.0
    %336 = vmatpush1.msra.mxu0 0.0
    %337 = vmatprep.mubr.f32.mxu0 0.0
    %338 = vmatmul.mubr.f32.gmra.mrb[0].mxu0 %v271
    %v339 = vpop.f32.mrb[0].mxu0
    %v340 = vadd.f32 %v266, %v339
    %v341 = vpop.f32.mrb[0].mxu0
    %342 = vdwg.mxu0
    %v344 = vlaneseq
    %v345 = vshrl.u32 %v344, 7
    %v346 = vsub.s32 0, %v345
    %v347 = vrot.slane %v102, %v346
    %v349 = vadd.f32 %v340, %v347
    %351 = vrot.lane.b32.xlu0 %v349, 16
    %v352 = vpop.permute.xlu0 %351
    %354 = vrot.lane.b32.xlu0 %v349, 32
    %v355 = vpop.permute.xlu0 %354
    %v357 = vsel %vm195, %v349, %v352
    %v358 = vsel %vm269, %v357, %v355
    %360 = vrot.lane.b32.xlu0 %v174, 80
    %v361 = vpop.permute.xlu0 %360
    %v363 = vmul.f32 %v358, %v361
    %v364 = vsel %vm103, %v363, %v355
    %vm365 = vcmask 588800
    %366 = vst.msk [vmem:[#allocation11] sm:$0xff] %vm365, %v364
    // Predicated region
    $region46: #{tpu_custom_call.1} parent=1 // pred_check
      _
    $region47: #{tpu_custom_call.1} parent=1 // pred_check_branch
      %368 = sbr.rel (0) target = $region49
    $region48: #{tpu_custom_call.1} parent=1 // pred_region
      %s370 = ssub.s32 128, 128
      %371 = vsyncadd [#allocation4], %s370
      %s373 = sshll.u32 [#allocation11], 4
      %s374 = int_to_ptr.vmem [resolvable:$true] %s373
      %376 = dma.vmem_to_hbm [thread:$0]  %s374, 128, %s6, [#allocation4]
    $region49: #{tpu_custom_call.1} parent=1 // pred_fallthru
      _
    // Predicated region
    $region50: #{tpu_custom_call.1} parent=1 // pred_check
      _
    $region51: #{tpu_custom_call.1} parent=1 // pred_check_branch
      %378 = sbr.rel (0) target = $region53
    $region52: #{tpu_custom_call.1} parent=1 // pred_region
      %379 = dma.done [#allocation4], 128
    $region53: #{tpu_custom_call.1} parent=1 // pred_fallthru
      _
    %380 = vsyncpa [#allocation3], 1
    %381 = vsyncpa [#allocation6], 1
    %382 = vsyncpa [#allocation9], 1
    %383 = vsyncpa [#allocation4], 1

</llo_original>
